<compile_context>
chip_gen: v6e
topology: v6e:2x2x1
jax: 0.10.0
libtpu: 0.0.40
codegen_flags: <defaults>
</compile_context>

<pallas_src>
import functools

import jax
import jax.numpy as jnp
from jax.experimental import pallas as pl
from jax.experimental.pallas import tpu as pltpu


def _round_up(x, m):
    return ((x + m - 1) // m) * m


def _sublane(dtype):
    # Native sublane packing: 8 rows for 4-byte, 16 for 2-byte, 32 for 1-byte.
    return max(8, 32 // jnp.dtype(dtype).itemsize)


def _largest_tile(dim, cap):
    """Largest multiple of 128 <= cap that divides `dim` (dim is a 128-multiple)."""
    cap = min(cap, dim)
    for c in range(cap - cap % 128, 127, -128):
        if dim % c == 0:
            return c
    return 128


# ---------------------------------------------------------------------------
# Kernels
# ---------------------------------------------------------------------------
def _linear_kernel_single_k(x_ref, wt_ref, b_ref, o_ref):
    """Whole K fits in one tile: dot + bias, no accumulator bookkeeping."""
    acc = jnp.dot(x_ref[...], wt_ref[...], preferred_element_type=jnp.float32)
    o_ref[...] = (acc + b_ref[...]).astype(o_ref.dtype)


def _linear_kernel_acc_out(x_ref, wt_ref, b_ref, o_ref):
    """K tiled, f32 output: accumulate directly into the resident output tile."""
    @pl.when(pl.program_id(2) == 0)
    def _init():
        o_ref[...] = jnp.broadcast_to(b_ref[...], o_ref.shape)

    o_ref[...] += jnp.dot(
        x_ref[...], wt_ref[...], preferred_element_type=jnp.float32
    )


def _linear_kernel_scratch(x_ref, wt_ref, b_ref, o_ref, acc_ref):
    """K tiled, non-f32 output: f32 scratch accumulator, cast on finalize."""
    k = pl.program_id(2)

    @pl.when(k == 0)
    def _init():
        acc_ref[...] = jnp.broadcast_to(b_ref[...], acc_ref.shape)

    acc_ref[...] += jnp.dot(
        x_ref[...], wt_ref[...], preferred_element_type=jnp.float32
    )

    @pl.when(k == pl.num_programs(2) - 1)
    def _finalize():
        o_ref[...] = acc_ref[...].astype(o_ref.dtype)


# ---------------------------------------------------------------------------
# One-time parameter preparation (hoisted out of the per-call path)
# ---------------------------------------------------------------------------
def prepare_linear_params(weight, bias, compute_dtype=None):
    """Transpose to [indim, outdim], pad lane dims to 128-multiples, cast the
    weight to the MXU compute dtype.  Bias is kept in float32 (matches the f32
    accumulator).  Call once per weight; reuse the result across forwards."""
    outdim, indim = weight.shape
    cdt = jnp.dtype(compute_dtype) if compute_dtype is not None else weight.dtype
    k_p = _round_up(indim, 128)
    o_p = _round_up(outdim, 128)

    w_t = weight.T.astype(cdt)  # [indim, outdim]
    if (k_p, o_p) != (indim, outdim):
        w_t = jnp.zeros((k_p, o_p), cdt).at[:indim, :outdim].set(w_t)

    b = bias.astype(jnp.float32)
    if o_p != outdim:
        b = jnp.zeros((o_p,), jnp.float32).at[:outdim].set(b)
    return w_t, b.reshape(1, o_p)


# ---------------------------------------------------------------------------
# Pallas forward on prepared parameters
# ---------------------------------------------------------------------------
@functools.partial(
    jax.jit, static_argnames=("outdim", "out_dtype", "tm_cap", "tn_cap", "tk_cap")
)
def linear_forward_prepared(
    x, w_t, b_row, *, outdim, out_dtype=None, tm_cap=512, tn_cap=512, tk_cap=1024
):
    """y = x @ W^T + b with W already transposed/padded by prepare_linear_params.

    x:     [n, indim]
    w_t:   [k_p, o_p]   (k_p, o_p multiples of 128; indim <= k_p, outdim <= o_p)
    b_row: [1, o_p]     float32
    """
    n, indim = x.shape
    k_p, o_p = w_t.shape
    assert indim <= k_p and outdim <= o_p
    cdt = w_t.dtype
    out_dtype = jnp.dtype(out_dtype) if out_dtype is not None else jnp.dtype(x.dtype)

    # ---- tile selection -------------------------------------------------
    sub = _sublane(cdt)
    tk = k_p if k_p <= tk_cap else _largest_tile(k_p, tk_cap)
    tn = o_p if o_p <= tn_cap else _largest_tile(o_p, tn_cap)

    n_sub = _round_up(n, sub)
    gm = -(-n_sub // tm_cap)                      # cdiv
    tm = _round_up(-(-n_sub // gm), sub)
    n_pad = gm * tm
    gn = o_p // tn
    gk = k_p // tk

    # v7x megacore: expose at least 2 parallel (i, j) blocks when possible.
    if gm * gn < 2:
        if o_p >= 256 and o_p % 256 == 0:
            tn = o_p // 2
            gn = 2
        elif n_sub >= 2 * sub:
            gm = 2
            tm = _round_up(-(-n_sub // 2), sub)
            n_pad = gm * tm

    # ---- per-call input prep (gated: free when already aligned) ---------
    x_c = x.astype(cdt)
    if (n_pad, k_p) != (n, indim):
        x_c = jnp.zeros((n_pad, k_p), cdt).at[:n, :indim].set(x_c)

    # ---- advisory cost estimate (counts re-reads from the index maps) ---
    c_isz = jnp.dtype(cdt).itemsize
    o_isz = jnp.dtype(out_dtype).itemsize
    cost = pl.CostEstimate(
        flops=2 * n_pad * k_p * o_p,
        transcendentals=0,
        bytes_accessed=(gn * n_pad * k_p + gm * k_p * o_p) * c_isz
        + o_p * 4
        + n_pad * o_p * o_isz,
    )

    # ---- kernel selection ------------------------------------------------
    if gk == 1:
        kernel = _linear_kernel_single_k
        scratch = []
    elif out_dtype == jnp.dtype(jnp.float32):
        kernel = _linear_kernel_acc_out
        scratch = []
    else:
        kernel = _linear_kernel_scratch
        scratch = [pltpu.VMEM((tm, tn), jnp.float32)]

    out_padded = pl.pallas_call(
        kernel,
        out_shape=jax.ShapeDtypeStruct((n_pad, o_p), out_dtype),
        grid_spec=pltpu.PrefetchScalarGridSpec(
            num_scalar_prefetch=0,
            grid=(gm, gn, gk),
            in_specs=[
                pl.BlockSpec((tm, tk), lambda i, j, k: (i, k)),
                pl.BlockSpec((tk, tn), lambda i, j, k: (k, j)),
                pl.BlockSpec((1, tn), lambda i, j, k: (0, j)),
            ],
            out_specs=pl.BlockSpec((tm, tn), lambda i, j, k: (i, j)),
            scratch_shapes=scratch,
        ),
        compiler_params=pltpu.CompilerParams(
            dimension_semantics=("parallel", "parallel", "arbitrary"),
            vmem_limit_bytes=32 * 1024 * 1024,
        ),
        cost_estimate=cost,
    )(x_c, w_t, b_row)

    if (n_pad, o_p) != (n, outdim):
        out_padded = out_padded[:n, :outdim]
    return out_padded


# ---------------------------------------------------------------------------
# Convenience wrappers (uncached path + module-style API)
# ---------------------------------------------------------------------------
_PALLAS_MIN_FLOPS = 1 << 22  # below this, XLA's fused dot beats kernel launch


def linear_forward(x, weight, bias, *, use_pallas=None, compute_dtype=None):
    """Uncached path: preps the weight on the fly.  Prefer the class (or
    prepare_linear_params + linear_forward_prepared) when calling repeatedly."""
    n, indim = x.shape
    outdim = weight.shape[0]
    if use_pallas is None:
        use_pallas = 2 * n * indim * outdim >= _PALLAS_MIN_FLOPS
    if not use_pallas:
        return x @ weight.T + bias
    w_t, b_row = prepare_linear_params(weight, bias, compute_dtype)
    return linear_forward_prepared(x, w_t, b_row, outdim=outdim, out_dtype=x.dtype)


def network_phenotype_prediction(x, params, *, use_pallas=None):
    """Functional mirror of Network_phenotype_prediction.forward.
    Returns (regression_output, regression_params)."""
    out = linear_forward(x, params["weight"], params["bias"], use_pallas=use_pallas)
    return out, params


class NetworkPhenotypePrediction:
    """JAX/Pallas mirror of the PyTorch module; caches the prepared weight
    (transpose + pad + optional bf16 cast) at construction time."""

    def __init__(self, key, indim, outdim, dtype=jnp.float32, compute_dtype=None,
                 use_pallas=True):
        self.indim, self.outdim = indim, outdim
        self.use_pallas = use_pallas
        self.out_dtype = dtype
        kw, kb = jax.random.split(key)
        bound = 1.0 / float(indim) ** 0.5  # nn.Linear default init
        self.weight = jax.random.uniform(kw, (outdim, indim), dtype, -bound, bound)
        self.bias = jax.random.uniform(kb, (outdim,), dtype, -bound, bound)
        # One-time prep (hoisted out of the per-call path).
        self.w_t, self.b_row = prepare_linear_params(
            self.weight, self.bias, compute_dtype
        )

    def __call__(self, x):
        if self.use_pallas:
            out = linear_forward_prepared(
                x, self.w_t, self.b_row, outdim=self.outdim, out_dtype=self.out_dtype
            )
        else:
            out = x @ self.weight.T + self.bias
        # TODO(synk): PyTorch returns the nn.Linear module object as the second
        # output; here we return its parameter dict instead.
        return out, {"weight": self.weight, "bias": self.bias}


if __name__ == "__main__":
    key = jax.random.PRNGKey(0)

    # ---- Test 1: module-sized small shapes, f32, single-K kernel ----------
    indim, outdim, batch = 32, 16, 8
    kx, kmod, key = jax.random.split(key, 3)
    x = jax.random.normal(kx, (batch, indim), jnp.float32)
    model = NetworkPhenotypePrediction(kmod, indim, outdim)
    out, reg_params = model(x)
    out = jax.block_until_ready(out)
    ref = x @ model.weight.T + model.bias
    assert out.shape == (batch, outdim)
    assert jnp.allclose(out, ref, atol=1e-5, rtol=1e-5)
    assert reg_params["weight"] is model.weight

    # ---- Test 2: larger ragged shape: K tiling (accumulate-into-output),
    #      M split for 2 parallel blocks, gated padding + output slice -------
    n2, in2, out2 = 300, 1536, 272
    kx2, kw2, key = jax.random.split(key, 3)
    x2 = jax.random.normal(kx2, (n2, in2), jnp.float32)
    model2 = NetworkPhenotypePrediction(kw2, in2, out2)
    y2, _ = model2(x2)
    y2 = jax.block_until_ready(y2)
    ref2 = x2 @ model2.weight.T + model2.bias
    assert y2.shape == (n2, out2)
    assert jnp.allclose(y2, ref2, atol=1e-3, rtol=1e-3)

    # ---- Test 3: bf16 MXU-native operand path (f32 accumulator, f32 bias) --
    model3 = NetworkPhenotypePrediction(kmod, indim, outdim,
                                        compute_dtype=jnp.bfloat16)
    y3, _ = model3(x)
    y3 = jax.block_until_ready(y3)
    assert y3.dtype == jnp.float32
    assert jnp.allclose(y3, ref, atol=5e-2, rtol=5e-2)

    # ---- Test 4: tiny-shape auto-dispatch falls back to plain XLA dot ------
    out_auto, _ = network_phenotype_prediction(
        x, {"weight": model.weight, "bias": model.bias}
    )
    out_auto = jax.block_until_ready(out_auto)
    assert jnp.allclose(out_auto, ref, atol=1e-5, rtol=1e-5)

    print("KERNEL_OK")
</pallas_src>

<mosaic_0001>
module attributes {stable_mosaic.version = 11 : i64} {
  func.func @_linear_kernel_single_k(%arg0: i32, %arg1: i32, %arg2: i32, %arg3: memref<8x128xf32, #tpu.memory_space<vmem>>, %arg4: memref<128x128xf32, #tpu.memory_space<vmem>>, %arg5: memref<1x128xf32, #tpu.memory_space<vmem>>, %arg6: memref<8x128xf32, #tpu.memory_space<vmem>>) attributes {dimension_semantics = [#tpu.dimension_semantics<parallel>, #tpu.dimension_semantics<parallel>, #tpu.dimension_semantics<arbitrary>], iteration_bounds = array<i64: 1, 1, 1>, scalar_prefetch = 0 : i64, scratch_operands = 0 : i64, tpu.core_type = #tpu.core_type<tc>, window_params = [{transform_indices = @transform_0, window_bounds = array<i64: 8, 128>}, {transform_indices = @transform_1, window_bounds = array<i64: 128, 128>}, {transform_indices = @transform_2, window_bounds = array<i64: 1, 128>}, {transform_indices = @transform_3, window_bounds = array<i64: 8, 128>}]} {
    %c0 = arith.constant 0 : index
    %c0_0 = arith.constant 0 : index
    %0 = vector.load %arg3[%c0, %c0_0] : memref<8x128xf32, #tpu.memory_space<vmem>>, vector<8x128xf32>
    %c0_1 = arith.constant 0 : index
    %c0_2 = arith.constant 0 : index
    %1 = vector.load %arg4[%c0_1, %c0_2] : memref<128x128xf32, #tpu.memory_space<vmem>>, vector<128x128xf32>
    %cst = arith.constant dense<0.000000e+00> : vector<8x128xf32>
    %2 = tpu.matmul %0, %1, %cst {dimension_numbers = #tpu.dot_dimension_numbers<[1], [0], [0], [1], [0, 0, 1, 1], [], []>} : vector<8x128xf32>, vector<128x128xf32>, vector<8x128xf32> -> vector<8x128xf32>
    %c0_3 = arith.constant 0 : index
    %c0_4 = arith.constant 0 : index
    %3 = vector.load %arg5[%c0_3, %c0_4] : memref<1x128xf32, #tpu.memory_space<vmem>>, vector<1x128xf32>
    %4 = vector.broadcast %3 : vector<1x128xf32> to vector<8x128xf32>
    %5 = arith.addf %2, %4 : vector<8x128xf32>
    %c0_5 = arith.constant 0 : index
    %c0_6 = arith.constant 0 : index
    %6 = vector.load %arg6[%c0_5, %c0_6] : memref<8x128xf32, #tpu.memory_space<vmem>>, vector<8x128xf32>
    tpu.vector_store %arg6[%c0_5, %c0_6], %5 {strides = array<i32>} : memref<8x128xf32, #tpu.memory_space<vmem>>, vector<8x128xf32>,
    return
  }
  func.func @transform_0(%arg0: i32, %arg1: i32, %arg2: i32) -> (i32, i32) {
    %c0_i32 = arith.constant 0 : i32
    return %arg0, %arg2 : i32, i32
  }
  func.func @transform_1(%arg0: i32, %arg1: i32, %arg2: i32) -> (i32, i32) {
    %c0_i32 = arith.constant 0 : i32
    return %arg2, %arg1 : i32, i32
  }
  func.func @transform_2(%arg0: i32, %arg1: i32, %arg2: i32) -> (i32, i32) {
    %c0_i32 = arith.constant 0 : i32
    %c0_i32_0 = arith.constant 0 : i32
    return %c0_i32, %arg1 : i32, i32
  }
  func.func @transform_3(%arg0: i32, %arg1: i32, %arg2: i32) -> (i32, i32) {
    %c0_i32 = arith.constant 0 : i32
    return %arg0, %arg1 : i32, i32
  }
}

</mosaic_0001>

<llo_original>
// kernel: linear_forward_prepared.1
$region0: #{linear_forward_prepared.1}
  #allocation0 [shape = 'u32[]', space=smem, size = 0x4, offset = 0x4, fixed_abs, tag = 'smem constant byte address 0x4 - core index']
  #allocation1 [shape = 'u32[144,128]{1,0:T(1,128)}', space=vmem, size = 0x12000, scoped, tag = 'internal scratch']
  %s0 = inlined_call_operand.vmem [shape: f32[8,128], index: 0, kind: input, shape index: {}]
  %s1 = inlined_call_operand.hbm [shape: f32[128,128], index: 1, kind: input, shape index: {}]
  %s2 = inlined_call_operand.vmem [shape: f32[1,128], index: 2, kind: input, shape index: {}]
  %s3 = inlined_call_operand.hbm [shape: f32[8,128], index: 3, kind: output, shape index: {}]
  %s4 = sld [smem:[#allocation0]]
  $region26: #{linear_forward_prepared.1} parent=0
    _
  %s6 = ssub.s32 1, %s4
  %s7 = scalar_select 0, %s6, %s4
  $region1: #{linear_forward_prepared.1} parent=0
    #allocation2 [shape = 'u8[65536]{0}', space=vmem, size = 0x10000, scoped, tag = 'input window, operand 1, single buffered']
    #allocation3 [shape = 's32[1]{0}', space=sflag, size = 0x4, scoped, tag = 'scoped memory for linear_forward_prepared.1']
    #allocation4 [shape = 's32[1]{0}', space=sflag, size = 0x4, scoped, tag = 'scoped memory for linear_forward_prepared.1']
    #allocation5 [shape = 'u8[4096]{0}', space=vmem, size = 0x1000, scoped, tag = 'output window, operand 0, single buffered']
    %8 = vsyncpa [#allocation3], 0
    %9 = vsyncpa [#allocation4], 0
    // Predicated region
    $region2: #{linear_forward_prepared.1} parent=1 // pred_check
      _
    $region3: #{linear_forward_prepared.1} parent=1 // pred_check_branch
      %11 = sbr.rel (0) target = $region5
    $region4: #{linear_forward_prepared.1} parent=1 // pred_region
      _
    $region5: #{linear_forward_prepared.1} parent=1 // pred_fallthru
      _
    // Predicated region
    $region6: #{linear_forward_prepared.1} parent=1 // pred_check
      _
    $region7: #{linear_forward_prepared.1} parent=1 // pred_check_branch
      %13 = sbr.rel (0) target = $region9
    $region8: #{linear_forward_prepared.1} parent=1 // pred_region
      %s15 = ssub.s32 2048, 2048
      %16 = vsyncadd [#allocation3], %s15
      %s17 = sshll.u32 [#allocation2], 4
      %s18 = int_to_ptr.vmem [resolvable:$true] %s17
      %23 = dma.hbm_to_vmem [thread:$0]  %s1, 2048, %s18, [#allocation3], 128, 128, 8
    $region9: #{linear_forward_prepared.1} parent=1 // pred_fallthru
      _
    // Predicated region
    $region10: #{linear_forward_prepared.1} parent=1 // pred_check
      _
    $region11: #{linear_forward_prepared.1} parent=1 // pred_check_branch
      %25 = sbr.rel (0) target = $region13
    $region12: #{linear_forward_prepared.1} parent=1 // pred_region
      _
    $region13: #{linear_forward_prepared.1} parent=1 // pred_fallthru
      _
    // Predicated region
    $region14: #{linear_forward_prepared.1} parent=1 // pred_check
      _
    $region15: #{linear_forward_prepared.1} parent=1 // pred_check_branch
      %27 = sbr.rel (0) target = $region17
    $region16: #{linear_forward_prepared.1} parent=1 // pred_region
      %28 = dma.done [#allocation3], 2048
    $region17: #{linear_forward_prepared.1} parent=1 // pred_fallthru
      _
    %v29 = vld [vmem:[%s0] sm:$0xff]
    %v30 = vld [vmem:[#allocation2] sm:$0xff]
    %v31 = vld [vmem:[#allocation2 + $0x8] sm:$0xff]
    %v32 = vld [vmem:[#allocation2 + $0x10] sm:$0xff]
    %v33 = vld [vmem:[#allocation2 + $0x18] sm:$0xff]
    %v34 = vld [vmem:[#allocation2 + $0x20] sm:$0xff]
    %v35 = vld [vmem:[#allocation2 + $0x28] sm:$0xff]
    %v36 = vld [vmem:[#allocation2 + $0x30] sm:$0xff]
    %v37 = vld [vmem:[#allocation2 + $0x38] sm:$0xff]
    %v38 = vld [vmem:[#allocation2 + $0x40] sm:$0xff]
    %v39 = vld [vmem:[#allocation2 + $0x48] sm:$0xff]
    %v40 = vld [vmem:[#allocation2 + $0x50] sm:$0xff]
    %v41 = vld [vmem:[#allocation2 + $0x58] sm:$0xff]
    %v42 = vld [vmem:[#allocation2 + $0x60] sm:$0xff]
    %v43 = vld [vmem:[#allocation2 + $0x68] sm:$0xff]
    %v44 = vld [vmem:[#allocation2 + $0x70] sm:$0xff]
    %v45 = vld [vmem:[#allocation2 + $0x78] sm:$0xff]
    %v46 = vld [vmem:[%s2] sm:$0x1]
    %v48 = vlaneseq
    %v49 = vshrl.u32 %v48, 7
    %v50 = vsub.s32 0, %v49
    %v51 = vrot.slane %v46, %v50
    %53 = vmatprep.subr.mxu0 0.0
    %54 = vmatpush1.msra.mxu0 %v45
    %55 = vmatprep.subr.mxu0 0.0
    %56 = vmatpush1.msra.mxu0 %v44
    %57 = vmatprep.subr.mxu0 0.0
    %58 = vmatpush1.msra.mxu0 %v43
    %59 = vmatprep.subr.mxu0 0.0
    %60 = vmatpush1.msra.mxu0 %v42
    %61 = vmatprep.subr.mxu0 0.0
    %62 = vmatpush1.msra.mxu0 %v41
    %63 = vmatprep.subr.mxu0 0.0
    %64 = vmatpush1.msra.mxu0 %v40
    %65 = vmatprep.subr.mxu0 0.0
    %66 = vmatpush1.msra.mxu0 %v39
    %67 = vmatprep.subr.mxu0 0.0
    %68 = vmatpush1.msra.mxu0 %v38
    %69 = vmatprep.subr.mxu0 0.0
    %70 = vmatpush1.msra.mxu0 %v37
    %71 = vmatprep.subr.mxu0 0.0
    %72 = vmatpush1.msra.mxu0 %v36
    %73 = vmatprep.subr.mxu0 0.0
    %74 = vmatpush1.msra.mxu0 %v35
    %75 = vmatprep.subr.mxu0 0.0
    %76 = vmatpush1.msra.mxu0 %v34
    %77 = vmatprep.subr.mxu0 0.0
    %78 = vmatpush1.msra.mxu0 %v33
    %79 = vmatprep.subr.mxu0 0.0
    %80 = vmatpush1.msra.mxu0 %v32
    %81 = vmatprep.subr.mxu0 0.0
    %82 = vmatpush1.msra.mxu0 %v31
    %83 = vmatprep.subr.mxu0 0.0
    %84 = vmatpush1.msra.mxu0 %v30
    %85 = vmatprep.subr.mxu0 0.0
    %86 = vmatpush2.msra.mxu0 0.0
    %87 = vmatprep.subr.mxu0 0.0
    %88 = vmatpush2.msra.mxu0 0.0
    %89 = vmatprep.subr.mxu0 0.0
    %90 = vmatpush2.msra.mxu0 0.0
    %91 = vmatprep.subr.mxu0 0.0
    %92 = vmatpush2.msra.mxu0 0.0
    %93 = vmatprep.subr.mxu0 0.0
    %94 = vmatpush2.msra.mxu0 0.0
    %95 = vmatprep.subr.mxu0 0.0
    %96 = vmatpush2.msra.mxu0 0.0
    %97 = vmatprep.subr.mxu0 0.0
    %98 = vmatpush2.msra.mxu0 0.0
    %99 = vmatprep.subr.mxu0 0.0
    %100 = vmatpush2.msra.mxu0 0.0
    %101 = vmatprep.subr.mxu0 0.0
    %102 = vmatpush2.msra.mxu0 0.0
    %103 = vmatprep.subr.mxu0 0.0
    %104 = vmatpush2.msra.mxu0 0.0
    %105 = vmatprep.subr.mxu0 0.0
    %106 = vmatpush2.msra.mxu0 0.0
    %107 = vmatprep.subr.mxu0 0.0
    %108 = vmatpush2.msra.mxu0 0.0
    %109 = vmatprep.subr.mxu0 0.0
    %110 = vmatpush2.msra.mxu0 0.0
    %111 = vmatprep.subr.mxu0 0.0
    %112 = vmatpush2.msra.mxu0 0.0
    %113 = vmatprep.subr.mxu0 0.0
    %114 = vmatpush2.msra.mxu0 0.0
    %115 = vmatprep.subr.mxu0 0.0
    %116 = vmatpush2.msra.mxu0 0.0
    %117 = vmatprep.mubr.f32.mxu0 0.0
    %118 = vmatmul.mubr.f32.gmra.mxu0 %v29
    %v119 = vpop.f32.mrf.mxu0
    %v120 = vadd.f32 %v51, %v119
    %v121 = vpop.f32.mrf.mxu0
    %122 = vdwg.mxu0
    %123 = vst [vmem:[#allocation5] sm:$0xff] %v120
    // Predicated region
    $region18: #{linear_forward_prepared.1} parent=1 // pred_check
      _
    $region19: #{linear_forward_prepared.1} parent=1 // pred_check_branch
      %125 = sbr.rel (0) target = $region21
    $region20: #{linear_forward_prepared.1} parent=1 // pred_region
      %s127 = ssub.s32 128, 128
      %128 = vsyncadd [#allocation4], %s127
      %s130 = sshll.u32 [#allocation5], 4
      %s131 = int_to_ptr.vmem [resolvable:$true] %s130
      %133 = dma.vmem_to_hbm [thread:$0]  %s131, 128, %s3, [#allocation4]
    $region21: #{linear_forward_prepared.1} parent=1 // pred_fallthru
      _
    // Predicated region
    $region22: #{linear_forward_prepared.1} parent=1 // pred_check
      _
    $region23: #{linear_forward_prepared.1} parent=1 // pred_check_branch
      %135 = sbr.rel (0) target = $region25
    $region24: #{linear_forward_prepared.1} parent=1 // pred_region
      %136 = dma.done [#allocation4], 128
    $region25: #{linear_forward_prepared.1} parent=1 // pred_fallthru
      _
    %137 = vsyncpa [#allocation3], 1
    %138 = vsyncpa [#allocation4], 1

</llo_original>
